<compile_context>
chip_gen: v5e
topology: v5e:2x2
jax: 0.10.0
libtpu: 0.0.40
codegen_flags: <defaults>
</compile_context>

<pallas_src>
import functools

import jax
import jax.numpy as jnp
from jax.experimental import pallas as pl
from jax.experimental.pallas import tpu as pltpu


_LANE = 128
_SUBLANE = 8


def _round_up(n, m):
    return ((n + m - 1) // m) * m


def _cdiv(a, b):
    return (a + b - 1) // b


def _padded_tile_bytes(rows, cols, itemsize):
    """VMEM footprint of one (rows, cols) buffer after (8, 128) layout padding."""
    return _round_up(max(rows, 1), _SUBLANE) * _round_up(max(cols, 1), _LANE) * itemsize


def _tensorcores_per_chip():
    """Best-effort detection of 2-TensorCore chips (v7x).  Defaults to 1."""
    try:
        kind = jax.devices()[0].device_kind.lower()
    except Exception:
        return 1
    return 2 if "v7" in kind else 1


def _encoder_kernel(num_linear, z_ref, *refs):
    """refs = (W1, b1, W2, b2, ..., Wn, bn, out_ref)."""
    out_ref = refs[-1]
    param_refs = refs[:-1]

    x = z_ref[...]
    for li in range(num_linear):
        w = param_refs[2 * li][...]
        b = param_refs[2 * li + 1][...]          # (1, out_dim) -- broadcasts over rows
        # Feed the MXU in the weights' native dtype (bf16 goes straight in),
        # accumulate in f32.  Note: this downcasts f32 activations when the
        # weights are bf16; numerics then differ slightly from an all-f32 run.
        acc = jnp.dot(x.astype(w.dtype), w, preferred_element_type=jnp.float32)
        acc = acc + b.astype(jnp.float32)
        if li < num_linear - 1:
            acc = jnp.maximum(acc, 0.0)          # ReLU on hidden layers only
        x = acc
    out_ref[...] = x.astype(out_ref.dtype)


def _pad_params_lane_dense(params):
    """Zero-pad each layer's output width (and the following layer's input rows)
    up to a multiple of 128 lanes.  Padded weight columns and biases are zero,
    so the extra lanes carry exact zeros through ReLU and contribute nothing."""
    padded = []
    prev_out_pad = None
    for (w, b) in params:
        in_dim, out_dim = w.shape
        in_pad = in_dim if prev_out_pad is None else prev_out_pad
        out_pad = _round_up(out_dim, _LANE)
        if (in_pad, out_pad) == (in_dim, out_dim):
            w_p, b_p = w, b
        else:
            w_p = jnp.zeros((in_pad, out_pad), w.dtype).at[:in_dim, :out_dim].set(w)
            b_p = jnp.zeros((out_pad,), b.dtype).at[:out_dim].set(b)
        padded.append((w_p, b_p))
        prev_out_pad = out_pad
    return padded


def feature_encoder_forward(z, params, *, tile_m=None,
                            vmem_budget_bytes=40 * 1024 * 1024):
    """params: list of (W, b) with W shape (in, out), b shape (out,).

    z: (num_nodes, input_dim) -> returns (num_nodes, latent_dim).
    tile_m (optional) is an upper bound on the row tile; by default the tile
    is chosen from the VMEM budget.
    """
    num_nodes, input_dim = z.shape
    latent_dim = params[-1][0].shape[1]
    num_linear = len(params)
    out_dtype = z.dtype

    # ---- Lane-dense widths: pad hidden/latent widths to multiples of 128 ----
    padded_params = _pad_params_lane_dense(params)
    widths_pad = [w.shape[1] for (w, _) in padded_params]
    out_pad = widths_pad[-1]

    # ---- VMEM-budgeted row tile (padded footprints, double-buffered I/O) ----
    weight_bytes = sum(
        _padded_tile_bytes(w.shape[0], w.shape[1], w.dtype.itemsize)
        + _padded_tile_bytes(1, b.shape[0], b.dtype.itemsize)
        for (w, b) in padded_params)

    def footprint(t):
        f = 2 * _padded_tile_bytes(t, input_dim, z.dtype.itemsize)      # z (double buf)
        f += 2 * _padded_tile_bytes(t, out_pad, out_dtype.itemsize)     # out (double buf)
        f += 2 * weight_bytes                  # conservative: assume double-buffered weights
        f += sum(_padded_tile_bytes(t, wd, 4) for wd in widths_pad)     # live f32 intermediates
        return f

    rows8 = _round_up(num_nodes, _SUBLANE)
    min_grid = min(_tensorcores_per_chip(), max(1, num_nodes // _SUBLANE))
    t = min(rows8, 2048, _round_up(_cdiv(num_nodes, min_grid), _SUBLANE))
    if tile_m is not None:
        t = min(t, _round_up(int(tile_m), _SUBLANE))   # guard: keep multiple of 8
    t = max(t, _SUBLANE)
    while t > _SUBLANE and footprint(t) > vmem_budget_bytes:
        t = max(_SUBLANE, _round_up(t // 2, _SUBLANE))
    if t < rows8 and t >= 256:                         # MXU-friendly rows when multi-step
        t = (t // 256) * 256
    tile_m_eff = t
    grid_m = _cdiv(num_nodes, tile_m_eff)

    vmem_limit = int(min(48 * 1024 * 1024,
                         max(32 * 1024 * 1024, footprint(tile_m_eff) + (4 << 20))))

    # ---- Advisory cost hint for XLA scheduling around this small kernel ----
    dims = [input_dim] + widths_pad
    flops = 2 * num_nodes * sum(dims[i] * dims[i + 1] for i in range(len(dims) - 1))
    bytes_accessed = (
        z.size * z.dtype.itemsize
        + num_nodes * out_pad * out_dtype.itemsize
        + sum(w.size * w.dtype.itemsize + b.size * b.dtype.itemsize
              for (w, b) in padded_params))
    cost = pl.CostEstimate(flops=flops, transcendentals=0,
                           bytes_accessed=bytes_accessed)

    kernel = functools.partial(_encoder_kernel, num_linear)

    def build_and_call(single_buffer_weights):
        weight_kwargs = {}
        if single_buffer_weights:
            # Constant index_map -> fetched once; one buffer halves resident VMEM.
            weight_kwargs = dict(pipeline_mode=pl.Buffered(1))
        flat_args = []
        in_specs = [pl.BlockSpec((tile_m_eff, input_dim), lambda i: (i, 0))]
        for (w, b) in padded_params:
            flat_args.append(w)
            in_specs.append(pl.BlockSpec(w.shape, lambda i: (0, 0), **weight_kwargs))
            b2 = b.reshape(1, -1)
            flat_args.append(b2)
            in_specs.append(pl.BlockSpec(b2.shape, lambda i: (0, 0), **weight_kwargs))

        return pl.pallas_call(
            kernel,
            out_shape=jax.ShapeDtypeStruct((num_nodes, out_pad), out_dtype),
            grid_spec=pltpu.PrefetchScalarGridSpec(
                num_scalar_prefetch=0,
                grid=(grid_m,),
                in_specs=in_specs,
                out_specs=pl.BlockSpec((tile_m_eff, out_pad), lambda i: (i, 0)),
            ),
            compiler_params=pltpu.CompilerParams(
                dimension_semantics=("parallel",),
                vmem_limit_bytes=vmem_limit),
            cost_estimate=cost,
        )(z, *flat_args)

    try:
        out_padded = build_and_call(True)
    except Exception:
        # Fallback for jax versions without BlockSpec(pipeline_mode=pl.Buffered(1)).
        out_padded = build_and_call(False)

    if out_pad == latent_dim:
        return out_padded
    return out_padded[:, :latent_dim]


def xavier_uniform(key, shape, dtype=jnp.float32):
    fan_in, fan_out = shape
    limit = jnp.sqrt(6.0 / (fan_in + fan_out))
    return jax.random.uniform(key, shape, dtype, minval=-limit, maxval=limit)


def init_feature_encoder_params(key, input_dim, hidden_dim, latent_dim,
                                hidden_layers=2):
    """Deterministic init mirroring FeatureEncoder.__init__ / weight_init."""
    dims = [input_dim] + [hidden_dim] * hidden_layers + [latent_dim]
    params = []
    keys = jax.random.split(key, len(dims))  # len(dims)-1 linears + disp
    for li in range(len(dims) - 1):
        w = xavier_uniform(keys[li], (dims[li], dims[li + 1]))
        b = jnp.zeros((dims[li + 1],), jnp.float32)
        params.append((w, b))
    # TODO(synk): `disp` parameter exists in the module but is unused in forward().
    disp = jax.random.normal(keys[-1], (input_dim,), jnp.float32)
    return params, disp


if __name__ == "__main__":
    key = jax.random.PRNGKey(0)
    k_z, k_p = jax.random.split(key)

    # Small shapes consistent with the module's forward:
    # z: (num_nodes, input_dim) -> out: (num_nodes, latent_dim)
    num_nodes, input_dim, hidden_dim, latent_dim = 200, 16, 64, 32

    z = jax.random.normal(k_z, (num_nodes, input_dim), jnp.float32)
    params, disp = init_feature_encoder_params(
        k_p, input_dim=input_dim, hidden_dim=hidden_dim,
        latent_dim=latent_dim, hidden_layers=2)

    # Plain-JAX reference (PyTorch FeatureEncoder.forward semantics).
    def ref_fwd(z, params):
        x = z
        for i, (w, b) in enumerate(params):
            x = x @ w + b
            if i < len(params) - 1:
                x = jnp.maximum(x, 0.0)
        return x

    ref = ref_fwd(z, params)

    # Default: VMEM-budgeted tile (single or dual grid step depending on chip).
    out = feature_encoder_forward(z, params)
    out = jax.block_until_ready(out)
    assert out.shape == (num_nodes, latent_dim)
    assert jnp.allclose(out, ref, atol=1e-5, rtol=1e-5)

    # Exercise the multi-step grid / masked partial last row block path
    # (200 rows = 3*64 + 8 with tile_m=64).
    out_small_tile = feature_encoder_forward(z, params, tile_m=64)
    out_small_tile = jax.block_until_ready(out_small_tile)
    assert out_small_tile.shape == (num_nodes, latent_dim)
    assert jnp.allclose(out_small_tile, ref, atol=1e-5, rtol=1e-5)

    print("KERNEL_OK")
</pallas_src>

<mosaic_0001>
module attributes {stable_mosaic.version = 11 : i64} {
  func.func @_encoder_kernel(%arg0: i32, %arg1: memref<200x16xf32, #tpu.memory_space<vmem>>, %arg2: memref<16x128xf32, #tpu.memory_space<vmem>>, %arg3: memref<1x128xf32, #tpu.memory_space<vmem>>, %arg4: memref<128x128xf32, #tpu.memory_space<vmem>>, %arg5: memref<1x128xf32, #tpu.memory_space<vmem>>, %arg6: memref<128x128xf32, #tpu.memory_space<vmem>>, %arg7: memref<1x128xf32, #tpu.memory_space<vmem>>, %arg8: memref<200x128xf32, #tpu.memory_space<vmem>>) attributes {dimension_semantics = [#tpu.dimension_semantics<parallel>], iteration_bounds = array<i64: 1>, scalar_prefetch = 0 : i64, scratch_operands = 0 : i64, tpu.core_type = #tpu.core_type<tc>, window_params = [{transform_indices = @transform_0, window_bounds = array<i64: 200, 16>}, {pipeline_mode = #tpu.pipeline_mode<synchronous>, transform_indices = @transform_1, window_bounds = array<i64: 16, 128>}, {pipeline_mode = #tpu.pipeline_mode<synchronous>, transform_indices = @transform_2, window_bounds = array<i64: 1, 128>}, {pipeline_mode = #tpu.pipeline_mode<synchronous>, transform_indices = @transform_3, window_bounds = array<i64: 128, 128>}, {pipeline_mode = #tpu.pipeline_mode<synchronous>, transform_indices = @transform_4, window_bounds = array<i64: 1, 128>}, {pipeline_mode = #tpu.pipeline_mode<synchronous>, transform_indices = @transform_5, window_bounds = array<i64: 128, 128>}, {pipeline_mode = #tpu.pipeline_mode<synchronous>, transform_indices = @transform_6, window_bounds = array<i64: 1, 128>}, {transform_indices = @transform_7, window_bounds = array<i64: 200, 128>}]} {
    %c0 = arith.constant 0 : index
    %c0_0 = arith.constant 0 : index
    %0 = vector.load %arg1[%c0, %c0_0] : memref<200x16xf32, #tpu.memory_space<vmem>>, vector<200x16xf32>
    %c0_1 = arith.constant 0 : index
    %c0_2 = arith.constant 0 : index
    %1 = vector.load %arg2[%c0_1, %c0_2] : memref<16x128xf32, #tpu.memory_space<vmem>>, vector<16x128xf32>
    %c0_3 = arith.constant 0 : index
    %c0_4 = arith.constant 0 : index
    %2 = vector.load %arg3[%c0_3, %c0_4] : memref<1x128xf32, #tpu.memory_space<vmem>>, vector<1x128xf32>
    %cst = arith.constant dense<0.000000e+00> : vector<200x128xf32>
    %3 = tpu.matmul %0, %1, %cst {dimension_numbers = #tpu.dot_dimension_numbers<[1], [0], [0], [1], [0, 0, 1, 1], [], []>} : vector<200x16xf32>, vector<16x128xf32>, vector<200x128xf32> -> vector<200x128xf32>
    %4 = vector.broadcast %2 : vector<1x128xf32> to vector<200x128xf32>
    %5 = arith.addf %3, %4 : vector<200x128xf32>
    %cst_5 = arith.constant 0.000000e+00 : f32
    %6 = vector.broadcast %cst_5 : f32 to vector<200x128xf32>
    %7 = arith.maximumf %5, %6 : vector<200x128xf32>
    %c0_6 = arith.constant 0 : index
    %c0_7 = arith.constant 0 : index
    %8 = vector.load %arg4[%c0_6, %c0_7] : memref<128x128xf32, #tpu.memory_space<vmem>>, vector<128x128xf32>
    %c0_8 = arith.constant 0 : index
    %c0_9 = arith.constant 0 : index
    %9 = vector.load %arg5[%c0_8, %c0_9] : memref<1x128xf32, #tpu.memory_space<vmem>>, vector<1x128xf32>
    %cst_10 = arith.constant dense<0.000000e+00> : vector<200x128xf32>
    %10 = tpu.matmul %7, %8, %cst_10 {dimension_numbers = #tpu.dot_dimension_numbers<[1], [0], [0], [1], [0, 0, 1, 1], [], []>} : vector<200x128xf32>, vector<128x128xf32>, vector<200x128xf32> -> vector<200x128xf32>
    %11 = vector.broadcast %9 : vector<1x128xf32> to vector<200x128xf32>
    %12 = arith.addf %10, %11 : vector<200x128xf32>
    %cst_11 = arith.constant 0.000000e+00 : f32
    %13 = vector.broadcast %cst_11 : f32 to vector<200x128xf32>
    %14 = arith.maximumf %12, %13 : vector<200x128xf32>
    %c0_12 = arith.constant 0 : index
    %c0_13 = arith.constant 0 : index
    %15 = vector.load %arg6[%c0_12, %c0_13] : memref<128x128xf32, #tpu.memory_space<vmem>>, vector<128x128xf32>
    %c0_14 = arith.constant 0 : index
    %c0_15 = arith.constant 0 : index
    %16 = vector.load %arg7[%c0_14, %c0_15] : memref<1x128xf32, #tpu.memory_space<vmem>>, vector<1x128xf32>
    %cst_16 = arith.constant dense<0.000000e+00> : vector<200x128xf32>
    %17 = tpu.matmul %14, %15, %cst_16 {dimension_numbers = #tpu.dot_dimension_numbers<[1], [0], [0], [1], [0, 0, 1, 1], [], []>} : vector<200x128xf32>, vector<128x128xf32>, vector<200x128xf32> -> vector<200x128xf32>
    %18 = vector.broadcast %16 : vector<1x128xf32> to vector<200x128xf32>
    %19 = arith.addf %17, %18 : vector<200x128xf32>
    %c0_17 = arith.constant 0 : index
    %c0_18 = arith.constant 0 : index
    %20 = vector.load %arg8[%c0_17, %c0_18] : memref<200x128xf32, #tpu.memory_space<vmem>>, vector<200x128xf32>
    tpu.vector_store %arg8[%c0_17, %c0_18], %19 {strides = array<i32>} : memref<200x128xf32, #tpu.memory_space<vmem>>, vector<200x128xf32>,
    return
  }
  func.func @transform_0(%arg0: i32) -> (i32, i32) {
    %c0_i32 = arith.constant 0 : i32
    %c0_i32_0 = arith.constant 0 : i32
    return %arg0, %c0_i32 : i32, i32
  }
  func.func @transform_1(%arg0: i32) -> (i32, i32) {
    %c0_i32 = arith.constant 0 : i32
    %c0_i32_0 = arith.constant 0 : i32
    %c0_i32_1 = arith.constant 0 : i32
    return %c0_i32, %c0_i32_0 : i32, i32
  }
  func.func @transform_2(%arg0: i32) -> (i32, i32) {
    %c0_i32 = arith.constant 0 : i32
    %c0_i32_0 = arith.constant 0 : i32
    %c0_i32_1 = arith.constant 0 : i32
    return %c0_i32, %c0_i32_0 : i32, i32
  }
  func.func @transform_3(%arg0: i32) -> (i32, i32) {
    %c0_i32 = arith.constant 0 : i32
    %c0_i32_0 = arith.constant 0 : i32
    %c0_i32_1 = arith.constant 0 : i32
    return %c0_i32, %c0_i32_0 : i32, i32
  }
  func.func @transform_4(%arg0: i32) -> (i32, i32) {
    %c0_i32 = arith.constant 0 : i32
    %c0_i32_0 = arith.constant 0 : i32
    %c0_i32_1 = arith.constant 0 : i32
    return %c0_i32, %c0_i32_0 : i32, i32
  }
  func.func @transform_5(%arg0: i32) -> (i32, i32) {
    %c0_i32 = arith.constant 0 : i32
    %c0_i32_0 = arith.constant 0 : i32
    %c0_i32_1 = arith.constant 0 : i32
    return %c0_i32, %c0_i32_0 : i32, i32
  }
  func.func @transform_6(%arg0: i32) -> (i32, i32) {
    %c0_i32 = arith.constant 0 : i32
    %c0_i32_0 = arith.constant 0 : i32
    %c0_i32_1 = arith.constant 0 : i32
    return %c0_i32, %c0_i32_0 : i32, i32
  }
  func.func @transform_7(%arg0: i32) -> (i32, i32) {
    %c0_i32 = arith.constant 0 : i32
    %c0_i32_0 = arith.constant 0 : i32
    return %arg0, %c0_i32 : i32, i32
  }
}

module attributes {stable_mosaic.version = 11 : i64} {
  func.func @_encoder_kernel(%arg0: i32, %arg1: memref<200x16xf32, #tpu.memory_space<vmem>>, %arg2: memref<16x128xf32, #tpu.memory_space<vmem>>, %arg3: memref<1x128xf32, #tpu.memory_space<vmem>>, %arg4: memref<128x128xf32, #tpu.memory_space<vmem>>, %arg5: memref<1x128xf32, #tpu.memory_space<vmem>>, %arg6: memref<128x128xf32, #tpu.memory_space<vmem>>, %arg7: memref<1x128xf32, #tpu.memory_space<vmem>>, %arg8: memref<200x128xf32, #tpu.memory_space<vmem>>) attributes {dimension_semantics = [#tpu.dimension_semantics<parallel>], iteration_bounds = array<i64: 1>, scalar_prefetch = 0 : i64, scratch_operands = 0 : i64, tpu.core_type = #tpu.core_type<tc>, window_params = [{transform_indices = @transform_0, window_bounds = array<i64: 200, 16>}, {pipeline_mode = #tpu.pipeline_mode<synchronous>, transform_indices = @transform_1, window_bounds = array<i64: 16, 128>}, {pipeline_mode = #tpu.pipeline_mode<synchronous>, transform_indices = @transform_2, window_bounds = array<i64: 1, 128>}, {pipeline_mode = #tpu.pipeline_mode<synchronous>, transform_indices = @transform_3, window_bounds = array<i64: 128, 128>}, {pipeline_mode = #tpu.pipeline_mode<synchronous>, transform_indices = @transform_4, window_bounds = array<i64: 1, 128>}, {pipeline_mode = #tpu.pipeline_mode<synchronous>, transform_indices = @transform_5, window_bounds = array<i64: 128, 128>}, {pipeline_mode = #tpu.pipeline_mode<synchronous>, transform_indices = @transform_6, window_bounds = array<i64: 1, 128>}, {transform_indices = @transform_7, window_bounds = array<i64: 200, 128>}]} {
    %c0 = arith.constant 0 : index
    %c0_0 = arith.constant 0 : index
    %0 = vector.load %arg1[%c0, %c0_0] : memref<200x16xf32, #tpu.memory_space<vmem>>, vector<200x16xf32>
    %c0_1 = arith.constant 0 : index
    %c0_2 = arith.constant 0 : index
    %1 = vector.load %arg2[%c0_1, %c0_2] : memref<16x128xf32, #tpu.memory_space<vmem>>, vector<16x128xf32>
    %c0_3 = arith.constant 0 : index
    %c0_4 = arith.constant 0 : index
    %2 = vector.load %arg3[%c0_3, %c0_4] : memref<1x128xf32, #tpu.memory_space<vmem>>, vector<1x128xf32>
    %cst = arith.constant dense<0.000000e+00> : vector<200x128xf32>
    %3 = tpu.matmul %0, %1, %cst {dimension_numbers = #tpu.dot_dimension_numbers<[1], [0], [0], [1], [0, 0, 1, 1], [], []>} : vector<200x16xf32>, vector<16x128xf32>, vector<200x128xf32> -> vector<200x128xf32>
    %4 = vector.broadcast %2 : vector<1x128xf32> to vector<200x128xf32>
    %5 = arith.addf %3, %4 : vector<200x128xf32>
    %cst_5 = arith.constant 0.000000e+00 : f32
    %6 = vector.broadcast %cst_5 : f32 to vector<200x128xf32>
    %7 = arith.maximumf %5, %6 : vector<200x128xf32>
    %c0_6 = arith.constant 0 : index
    %c0_7 = arith.constant 0 : index
    %8 = vector.load %arg4[%c0_6, %c0_7] : memref<128x128xf32, #tpu.memory_space<vmem>>, vector<128x128xf32>
    %c0_8 = arith.constant 0 : index
    %c0_9 = arith.constant 0 : index
    %9 = vector.load %arg5[%c0_8, %c0_9] : memref<1x128xf32, #tpu.memory_space<vmem>>, vector<1x128xf32>
    %cst_10 = arith.constant dense<0.000000e+00> : vector<200x128xf32>
    %10 = tpu.matmul %7, %8, %cst_10 {dimension_numbers = #tpu.dot_dimension_numbers<[1], [0], [0], [1], [0, 0, 1, 1], [], []>} : vector<200x128xf32>, vector<128x128xf32>, vector<200x128xf32> -> vector<200x128xf32>
    %11 = vector.broadcast %9 : vector<1x128xf32> to vector<200x128xf32>
    %12 = arith.addf %10, %11 : vector<200x128xf32>
    %cst_11 = arith.constant 0.000000e+00 : f32
    %13 = vector.broadcast %cst_11 : f32 to vector<200x128xf32>
    %14 = arith.maximumf %12, %13 : vector<200x128xf32>
    %c0_12 = arith.constant 0 : index
    %c0_13 = arith.constant 0 : index
    %15 = vector.load %arg6[%c0_12, %c0_13] : memref<128x128xf32, #tpu.memory_space<vmem>>, vector<128x128xf32>
    %c0_14 = arith.constant 0 : index
    %c0_15 = arith.constant 0 : index
    %16 = vector.load %arg7[%c0_14, %c0_15] : memref<1x128xf32, #tpu.memory_space<vmem>>, vector<1x128xf32>
    %cst_16 = arith.constant dense<0.000000e+00> : vector<200x128xf32>
    %17 = tpu.matmul %14, %15, %cst_16 {dimension_numbers = #tpu.dot_dimension_numbers<[1], [0], [0], [1], [0, 0, 1, 1], [], []>} : vector<200x128xf32>, vector<128x128xf32>, vector<200x128xf32> -> vector<200x128xf32>
    %18 = vector.broadcast %16 : vector<1x128xf32> to vector<200x128xf32>
    %19 = arith.addf %17, %18 : vector<200x128xf32>
    %c0_17 = arith.constant 0 : index
    %c0_18 = arith.constant 0 : index
    %20 = vector.load %arg8[%c0_17, %c0_18] : memref<200x128xf32, #tpu.memory_space<vmem>>, vector<200x128xf32>
    tpu.vector_store %arg8[%c0_17, %c0_18], %19 {strides = array<i32>} : memref<200x128xf32, #tpu.memory_space<vmem>>, vector<200x128xf32>,
    return
  }
  func.func @transform_0(%arg0: i32) -> (i32, i32) {
    %c0_i32 = arith.constant 0 : i32
    %c0_i32_0 = arith.constant 0 : i32
    return %arg0, %c0_i32 : i32, i32
  }
  func.func @transform_1(%arg0: i32) -> (i32, i32) {
    %c0_i32 = arith.constant 0 : i32
    %c0_i32_0 = arith.constant 0 : i32
    %c0_i32_1 = arith.constant 0 : i32
    return %c0_i32, %c0_i32_0 : i32, i32
  }
  func.func @transform_2(%arg0: i32) -> (i32, i32) {
    %c0_i32 = arith.constant 0 : i32
    %c0_i32_0 = arith.constant 0 : i32
    %c0_i32_1 = arith.constant 0 : i32
    return %c0_i32, %c0_i32_0 : i32, i32
  }
  func.func @transform_3(%arg0: i32) -> (i32, i32) {
    %c0_i32 = arith.constant 0 : i32
    %c0_i32_0 = arith.constant 0 : i32
    %c0_i32_1 = arith.constant 0 : i32
    return %c0_i32, %c0_i32_0 : i32, i32
  }
  func.func @transform_4(%arg0: i32) -> (i32, i32) {
    %c0_i32 = arith.constant 0 : i32
    %c0_i32_0 = arith.constant 0 : i32
    %c0_i32_1 = arith.constant 0 : i32
    return %c0_i32, %c0_i32_0 : i32, i32
  }
  func.func @transform_5(%arg0: i32) -> (i32, i32) {
    %c0_i32 = arith.constant 0 : i32
    %c0_i32_0 = arith.constant 0 : i32
    %c0_i32_1 = arith.constant 0 : i32
    return %c0_i32, %c0_i32_0 : i32, i32
  }
  func.func @transform_6(%arg0: i32) -> (i32, i32) {
    %c0_i32 = arith.constant 0 : i32
    %c0_i32_0 = arith.constant 0 : i32
    %c0_i32_1 = arith.constant 0 : i32
    return %c0_i32, %c0_i32_0 : i32, i32
  }
  func.func @transform_7(%arg0: i32) -> (i32, i32) {
    %c0_i32 = arith.constant 0 : i32
    %c0_i32_0 = arith.constant 0 : i32
    return %arg0, %c0_i32 : i32, i32
  }
}

</mosaic_0001>

<llo_original>
// kernel: tpu_custom_call.1
$region0: #{tpu_custom_call.1}
  #allocation0 [shape = 'u32[]', space=smem, size = 0x4, offset = 0x4, fixed_abs, tag = 'smem constant byte address 0x4 - core index']
  #allocation1 [shape = 'u32[72,128]{1,0:T(1,128)}', space=vmem, size = 0x9000, scoped, tag = 'internal scratch']
  %s0 = inlined_call_operand.vmem [shape: f32[200,16], index: 0, kind: input, shape index: {}]
  %s1 = inlined_call_operand.vmem [shape: f32[16,128], index: 1, kind: input, shape index: {}]
  %s2 = inlined_call_operand.vmem [shape: f32[1,128], index: 2, kind: input, shape index: {}]
  %s3 = inlined_call_operand.vmem [shape: f32[128,128], index: 3, kind: input, shape index: {}]
  %s4 = inlined_call_operand.vmem [shape: f32[1,128], index: 4, kind: input, shape index: {}]
  %s5 = inlined_call_operand.hbm [shape: f32[128,128], index: 5, kind: input, shape index: {}]
  %s6 = inlined_call_operand.vmem [shape: f32[1,128], index: 6, kind: input, shape index: {}]
  %s7 = inlined_call_operand.hbm [shape: f32[200,128], index: 7, kind: output, shape index: {}]
  %s8 = sld [smem:[#allocation0]]
  $region42: #{tpu_custom_call.1} parent=0
    _
  %s10 = ssub.s32 1, %s8
  %s11 = scalar_select 0, %s10, %s8
  $region1: #{tpu_custom_call.1} parent=0
    #allocation2 [shape = 'u8[65536]{0}', space=vmem, size = 0x10000, scoped, tag = 'input window, operand 5, single buffered']
    #allocation3 [shape = 's32[1]{0}', space=sflag, size = 0x4, scoped, tag = 'scoped memory for tpu_custom_call.1']
    #allocation4 [shape = 's32[1]{0}', space=sflag, size = 0x4, scoped, tag = 'scoped memory for tpu_custom_call.1']
    #allocation5 [shape = 'u8[102400]{0}', space=vmem, size = 0x19000, scoped, tag = 'output window, operand 0, single buffered']
    %12 = vsyncpa [#allocation3], 0
    %13 = vsyncpa [#allocation4], 0
    // Predicated region
    $region2: #{tpu_custom_call.1} parent=1 // pred_check
      _
    $region3: #{tpu_custom_call.1} parent=1 // pred_check_branch
      %15 = sbr.rel (0) target = $region5
    $region4: #{tpu_custom_call.1} parent=1 // pred_region
      _
    $region5: #{tpu_custom_call.1} parent=1 // pred_fallthru
      _
    // Predicated region
    $region6: #{tpu_custom_call.1} parent=1 // pred_check
      _
    $region7: #{tpu_custom_call.1} parent=1 // pred_check_branch
      %17 = sbr.rel (0) target = $region9
    $region8: #{tpu_custom_call.1} parent=1 // pred_region
      _
    $region9: #{tpu_custom_call.1} parent=1 // pred_fallthru
      _
    // Predicated region
    $region10: #{tpu_custom_call.1} parent=1 // pred_check
      _
    $region11: #{tpu_custom_call.1} parent=1 // pred_check_branch
      %19 = sbr.rel (0) target = $region13
    $region12: #{tpu_custom_call.1} parent=1 // pred_region
      _
    $region13: #{tpu_custom_call.1} parent=1 // pred_fallthru
      _
    // Predicated region
    $region14: #{tpu_custom_call.1} parent=1 // pred_check
      _
    $region15: #{tpu_custom_call.1} parent=1 // pred_check_branch
      %21 = sbr.rel (0) target = $region17
    $region16: #{tpu_custom_call.1} parent=1 // pred_region
      _
    $region17: #{tpu_custom_call.1} parent=1 // pred_fallthru
      _
    // Predicated region
    $region18: #{tpu_custom_call.1} parent=1 // pred_check
      _
    $region19: #{tpu_custom_call.1} parent=1 // pred_check_branch
      %23 = sbr.rel (0) target = $region21
    $region20: #{tpu_custom_call.1} parent=1 // pred_region
      _
    $region21: #{tpu_custom_call.1} parent=1 // pred_fallthru
      _
    // Predicated region
    $region22: #{tpu_custom_call.1} parent=1 // pred_check
      _
    $region23: #{tpu_custom_call.1} parent=1 // pred_check_branch
      %25 = sbr.rel (0) target = $region25
    $region24: #{tpu_custom_call.1} parent=1 // pred_region
      %27 = vsyncadd [#allocation3], 0
      %s28 = sshll.u32 %s5, 4
      %s29 = int_to_ptr.hbm [resolvable:$true] %s28
      %s30 = sshll.u32 [#allocation2], 4
      %s31 = int_to_ptr.vmem [resolvable:$true] %s30
      %36 = dma.hbm_to_vmem [thread:$0]  %s29, 2048, %s31, [#allocation3], 128, 128, 8
    $region25: #{tpu_custom_call.1} parent=1 // pred_fallthru
      _
    // Predicated region
    $region26: #{tpu_custom_call.1} parent=1 // pred_check
      _
    $region27: #{tpu_custom_call.1} parent=1 // pred_check_branch
      %38 = sbr.rel (0) target = $region29
    $region28: #{tpu_custom_call.1} parent=1 // pred_region
      _
    $region29: #{tpu_custom_call.1} parent=1 // pred_fallthru
      _
    // Predicated region
    $region30: #{tpu_custom_call.1} parent=1 // pred_check
      _
    $region31: #{tpu_custom_call.1} parent=1 // pred_check_branch
      %40 = sbr.rel (0) target = $region33
    $region32: #{tpu_custom_call.1} parent=1 // pred_region
      %42 = dma.done [#allocation3], 2048
    $region33: #{tpu_custom_call.1} parent=1 // pred_fallthru
      _
    %v43 = vld [vmem:[%s0] sm:$0xff]
    %v44 = vld [vmem:[%s0 + $0x8] sm:$0xff]
    %v45 = vld [vmem:[%s0 + $0x10] sm:$0xff]
    %v46 = vld [vmem:[%s0 + $0x18] sm:$0xff]
    %v47 = vld [vmem:[%s0 + $0x20] sm:$0xff]
    %v48 = vld [vmem:[%s0 + $0x28] sm:$0xff]
    %v49 = vld [vmem:[%s0 + $0x30] sm:$0xff]
    %v50 = vld [vmem:[%s0 + $0x38] sm:$0xff]
    %v51 = vld [vmem:[%s0 + $0x40] sm:$0xff]
    %v52 = vld [vmem:[%s0 + $0x48] sm:$0xff]
    %v53 = vld [vmem:[%s0 + $0x50] sm:$0xff]
    %v54 = vld [vmem:[%s0 + $0x58] sm:$0xff]
    %v55 = vld [vmem:[%s0 + $0x60] sm:$0xff]
    %v56 = vld [vmem:[%s0 + $0x68] sm:$0xff]
    %v57 = vld [vmem:[%s0 + $0x70] sm:$0xff]
    %v58 = vld [vmem:[%s0 + $0x78] sm:$0xff]
    %v59 = vld [vmem:[%s0 + $0x80] sm:$0xff]
    %v60 = vld [vmem:[%s0 + $0x88] sm:$0xff]
    %v61 = vld [vmem:[%s0 + $0x90] sm:$0xff]
    %v62 = vld [vmem:[%s0 + $0x98] sm:$0xff]
    %v63 = vld [vmem:[%s0 + $0xa0] sm:$0xff]
    %v64 = vld [vmem:[%s0 + $0xa8] sm:$0xff]
    %v65 = vld [vmem:[%s0 + $0xb0] sm:$0xff]
    %v66 = vld [vmem:[%s0 + $0xb8] sm:$0xff]
    %v67 = vld [vmem:[%s0 + $0xc0] sm:$0xff]
    %v68 = vld [vmem:[%s1] sm:$0xff]
    %v69 = vld [vmem:[%s1 + $0x8] sm:$0xff]
    %v70 = vld [vmem:[%s2] sm:$0x1]
    %v72 = vperm.slane %v70, 0
    %vm74 = vcmask 130048
    %v76 = vsel %vm74, %v43, 0
    %v79 = vsel %vm74, %v44, 0
    %v82 = vsel %vm74, %v45, 0
    %v85 = vsel %vm74, %v46, 0
    %v88 = vsel %vm74, %v47, 0
    %v91 = vsel %vm74, %v48, 0
    %v94 = vsel %vm74, %v49, 0
    %v97 = vsel %vm74, %v50, 0
    %v100 = vsel %vm74, %v51, 0
    %v103 = vsel %vm74, %v52, 0
    %v106 = vsel %vm74, %v53, 0
    %v109 = vsel %vm74, %v54, 0
    %v112 = vsel %vm74, %v55, 0
    %v115 = vsel %vm74, %v56, 0
    %v118 = vsel %vm74, %v57, 0
    %v121 = vsel %vm74, %v58, 0
    %v124 = vsel %vm74, %v59, 0
    %v127 = vsel %vm74, %v60, 0
    %v130 = vsel %vm74, %v61, 0
    %v133 = vsel %vm74, %v62, 0
    %v136 = vsel %vm74, %v63, 0
    %v139 = vsel %vm74, %v64, 0
    %v142 = vsel %vm74, %v65, 0
    %v145 = vsel %vm74, %v66, 0
    %v148 = vsel %vm74, %v67, 0
    %150 = vmatpush.msra.mxu0 0.0
    %151 = vmatpush.msra.mxu0 0.0
    %152 = vmatpush.msra.mxu0 0.0
    %153 = vmatpush.msra.mxu0 0.0
    %154 = vmatpush.msra.mxu0 0.0
    %155 = vmatpush.msra.mxu0 0.0
    %156 = vmatpush.msra.mxu0 0.0
    %157 = vmatpush.msra.mxu0 0.0
    %158 = vmatpush.msra.mxu0 0.0
    %159 = vmatpush.msra.mxu0 0.0
    %160 = vmatpush.msra.mxu0 0.0
    %161 = vmatpush.msra.mxu0 0.0
    %162 = vmatpush.msra.mxu0 0.0
    %163 = vmatpush.msra.mxu0 0.0
    %164 = vmatpush.msra.mxu0 %v69
    %165 = vmatpush.msra.mxu0 %v68
    %166 = vmatmul.f32.gmra.mxu0 %v76
    %v167 = vpop.f32.mrf.mxu0
    %v168 = vadd.f32 %v72, %v167
    %169 = vmatmul.f32.gmra.mxu0 %v79
    %v170 = vpop.f32.mrf.mxu0
    %v171 = vadd.f32 %v72, %v170
    %172 = vmatmul.f32.gmra.mxu0 %v82
    %v173 = vpop.f32.mrf.mxu0
    %v174 = vadd.f32 %v72, %v173
    %175 = vmatmul.f32.gmra.mxu0 %v85
    %v176 = vpop.f32.mrf.mxu0
    %v177 = vadd.f32 %v72, %v176
    %178 = vmatmul.f32.gmra.mxu0 %v88
    %v179 = vpop.f32.mrf.mxu0
    %v180 = vadd.f32 %v72, %v179
    %181 = vmatmul.f32.gmra.mxu0 %v91
    %v182 = vpop.f32.mrf.mxu0
    %v183 = vadd.f32 %v72, %v182
    %184 = vmatmul.f32.gmra.mxu0 %v94
    %v185 = vpop.f32.mrf.mxu0
    %v186 = vadd.f32 %v72, %v185
    %187 = vmatmul.f32.gmra.mxu0 %v97
    %v188 = vpop.f32.mrf.mxu0
    %v189 = vadd.f32 %v72, %v188
    %190 = vmatmul.f32.gmra.mxu0 %v100
    %v191 = vpop.f32.mrf.mxu0
    %v192 = vadd.f32 %v72, %v191
    %193 = vmatmul.f32.gmra.mxu0 %v103
    %v194 = vpop.f32.mrf.mxu0
    %v195 = vadd.f32 %v72, %v194
    %196 = vmatmul.f32.gmra.mxu0 %v106
    %v197 = vpop.f32.mrf.mxu0
    %v198 = vadd.f32 %v72, %v197
    %199 = vmatmul.f32.gmra.mxu0 %v109
    %v200 = vpop.f32.mrf.mxu0
    %v201 = vadd.f32 %v72, %v200
    %202 = vmatmul.f32.gmra.mxu0 %v112
    %v203 = vpop.f32.mrf.mxu0
    %v204 = vadd.f32 %v72, %v203
    %205 = vmatmul.f32.gmra.mxu0 %v115
    %v206 = vpop.f32.mrf.mxu0
    %v207 = vadd.f32 %v72, %v206
    %208 = vmatmul.f32.gmra.mxu0 %v118
    %v209 = vpop.f32.mrf.mxu0
    %v210 = vadd.f32 %v72, %v209
    %211 = vmatmul.f32.gmra.mxu0 %v121
    %v212 = vpop.f32.mrf.mxu0
    %v213 = vadd.f32 %v72, %v212
    %214 = vmatmul.f32.gmra.mxu0 %v124
    %v215 = vpop.f32.mrf.mxu0
    %v216 = vadd.f32 %v72, %v215
    %217 = vmatmul.f32.gmra.mxu0 %v127
    %v218 = vpop.f32.mrf.mxu0
    %v219 = vadd.f32 %v72, %v218
    %220 = vmatmul.f32.gmra.mxu0 %v130
    %v221 = vpop.f32.mrf.mxu0
    %v222 = vadd.f32 %v72, %v221
    %223 = vmatmul.f32.gmra.mxu0 %v133
    %v224 = vpop.f32.mrf.mxu0
    %v225 = vadd.f32 %v72, %v224
    %226 = vmatmul.f32.gmra.mxu0 %v136
    %v227 = vpop.f32.mrf.mxu0
    %v228 = vadd.f32 %v72, %v227
    %229 = vmatmul.f32.gmra.mxu0 %v139
    %v230 = vpop.f32.mrf.mxu0
    %v231 = vadd.f32 %v72, %v230
    %232 = vmatmul.f32.gmra.mxu0 %v142
    %v233 = vpop.f32.mrf.mxu0
    %v234 = vadd.f32 %v72, %v233
    %235 = vmatmul.f32.gmra.mxu0 %v145
    %v236 = vpop.f32.mrf.mxu0
    %v237 = vadd.f32 %v72, %v236
    %238 = vmatmul.f32.gmra.mxu0 %v148
    %v239 = vpop.f32.mrf.mxu0
    %v240 = vadd.f32 %v72, %v239
    %241 = vdwg.mxu0
    %v242 = vmax.f32 %v168, 0.0
    %v243 = vmax.f32 %v171, 0.0
    %v244 = vmax.f32 %v174, 0.0
    %v245 = vmax.f32 %v177, 0.0
    %v246 = vmax.f32 %v180, 0.0
    %v247 = vmax.f32 %v183, 0.0
    %v248 = vmax.f32 %v186, 0.0
    %v249 = vmax.f32 %v189, 0.0
    %v250 = vmax.f32 %v192, 0.0
    %v251 = vmax.f32 %v195, 0.0
    %v252 = vmax.f32 %v198, 0.0
    %v253 = vmax.f32 %v201, 0.0
    %v254 = vmax.f32 %v204, 0.0
    %v255 = vmax.f32 %v207, 0.0
    %v256 = vmax.f32 %v210, 0.0
    %v257 = vmax.f32 %v213, 0.0
    %v258 = vmax.f32 %v216, 0.0
    %v259 = vmax.f32 %v219, 0.0
    %v260 = vmax.f32 %v222, 0.0
    %v261 = vmax.f32 %v225, 0.0
    %v262 = vmax.f32 %v228, 0.0
    %v263 = vmax.f32 %v231, 0.0
    %v264 = vmax.f32 %v234, 0.0
    %v265 = vmax.f32 %v237, 0.0
    %v266 = vmax.f32 %v240, 0.0
    %v267 = vld [vmem:[%s3] sm:$0xff]
    %v268 = vld [vmem:[%s3 + $0x8] sm:$0xff]
    %v269 = vld [vmem:[%s3 + $0x10] sm:$0xff]
    %v270 = vld [vmem:[%s3 + $0x18] sm:$0xff]
    %v271 = vld [vmem:[%s3 + $0x20] sm:$0xff]
    %v272 = vld [vmem:[%s3 + $0x28] sm:$0xff]
    %v273 = vld [vmem:[%s3 + $0x30] sm:$0xff]
    %v274 = vld [vmem:[%s3 + $0x38] sm:$0xff]
    %v275 = vld [vmem:[%s3 + $0x40] sm:$0xff]
    %v276 = vld [vmem:[%s3 + $0x48] sm:$0xff]
    %v277 = vld [vmem:[%s3 + $0x50] sm:$0xff]
    %v278 = vld [vmem:[%s3 + $0x58] sm:$0xff]
    %v279 = vld [vmem:[%s3 + $0x60] sm:$0xff]
    %v280 = vld [vmem:[%s3 + $0x68] sm:$0xff]
    %v281 = vld [vmem:[%s3 + $0x70] sm:$0xff]
    %v282 = vld [vmem:[%s3 + $0x78] sm:$0xff]
    %v283 = vld [vmem:[%s4] sm:$0x1]
    %v285 = vperm.slane %v283, 0
    %287 = vmatpush.msra.mxu0 %v282
    %288 = vmatpush.msra.mxu0 %v281
    %289 = vmatpush.msra.mxu0 %v280
    %290 = vmatpush.msra.mxu0 %v279
    %291 = vmatpush.msra.mxu0 %v278
    %292 = vmatpush.msra.mxu0 %v277
    %293 = vmatpush.msra.mxu0 %v276
    %294 = vmatpush.msra.mxu0 %v275
    %295 = vmatpush.msra.mxu0 %v274
    %296 = vmatpush.msra.mxu0 %v273
    %297 = vmatpush.msra.mxu0 %v272
    %298 = vmatpush.msra.mxu0 %v271
    %299 = vmatpush.msra.mxu0 %v270
    %300 = vmatpush.msra.mxu0 %v269
    %301 = vmatpush.msra.mxu0 %v268
    %302 = vmatpush.msra.mxu0 %v267
    %303 = vmatmul.f32.gmra.mxu0 %v242
    %v304 = vpop.f32.mrf.mxu0
    %v305 = vadd.f32 %v285, %v304
    %306 = vmatmul.f32.gmra.mxu0 %v243
    %v307 = vpop.f32.mrf.mxu0
    %v308 = vadd.f32 %v285, %v307
    %309 = vmatmul.f32.gmra.mxu0 %v244
    %v310 = vpop.f32.mrf.mxu0
    %v311 = vadd.f32 %v285, %v310
    %312 = vmatmul.f32.gmra.mxu0 %v245
    %v313 = vpop.f32.mrf.mxu0
    %v314 = vadd.f32 %v285, %v313
    %315 = vmatmul.f32.gmra.mxu0 %v246
    %v316 = vpop.f32.mrf.mxu0
    %v317 = vadd.f32 %v285, %v316
    %318 = vmatmul.f32.gmra.mxu0 %v247
    %v319 = vpop.f32.mrf.mxu0
    %v320 = vadd.f32 %v285, %v319
    %321 = vmatmul.f32.gmra.mxu0 %v248
    %v322 = vpop.f32.mrf.mxu0
    %v323 = vadd.f32 %v285, %v322
    %324 = vmatmul.f32.gmra.mxu0 %v249
    %v325 = vpop.f32.mrf.mxu0
    %v326 = vadd.f32 %v285, %v325
    %327 = vmatmul.f32.gmra.mxu0 %v250
    %v328 = vpop.f32.mrf.mxu0
    %v329 = vadd.f32 %v285, %v328
    %330 = vmatmul.f32.gmra.mxu0 %v251
    %v331 = vpop.f32.mrf.mxu0
    %v332 = vadd.f32 %v285, %v331
    %333 = vmatmul.f32.gmra.mxu0 %v252
    %v334 = vpop.f32.mrf.mxu0
    %v335 = vadd.f32 %v285, %v334
    %336 = vmatmul.f32.gmra.mxu0 %v253
    %v337 = vpop.f32.mrf.mxu0
    %v338 = vadd.f32 %v285, %v337
    %339 = vmatmul.f32.gmra.mxu0 %v254
    %v340 = vpop.f32.mrf.mxu0
    %v341 = vadd.f32 %v285, %v340
    %342 = vmatmul.f32.gmra.mxu0 %v255
    %v343 = vpop.f32.mrf.mxu0
    %v344 = vadd.f32 %v285, %v343
    %345 = vmatmul.f32.gmra.mxu0 %v256
    %v346 = vpop.f32.mrf.mxu0
    %v347 = vadd.f32 %v285, %v346
    %348 = vmatmul.f32.gmra.mxu0 %v257
    %v349 = vpop.f32.mrf.mxu0
    %v350 = vadd.f32 %v285, %v349
    %351 = vmatmul.f32.gmra.mxu0 %v258
    %v352 = vpop.f32.mrf.mxu0
    %v353 = vadd.f32 %v285, %v352
    %354 = vmatmul.f32.gmra.mxu0 %v259
    %v355 = vpop.f32.mrf.mxu0
    %v356 = vadd.f32 %v285, %v355
    %357 = vmatmul.f32.gmra.mxu0 %v260
    %v358 = vpop.f32.mrf.mxu0
    %v359 = vadd.f32 %v285, %v358
    %360 = vmatmul.f32.gmra.mxu0 %v261
    %v361 = vpop.f32.mrf.mxu0
    %v362 = vadd.f32 %v285, %v361
    %363 = vmatmul.f32.gmra.mxu0 %v262
    %v364 = vpop.f32.mrf.mxu0
    %v365 = vadd.f32 %v285, %v364
    %366 = vmatmul.f32.gmra.mxu0 %v263
    %v367 = vpop.f32.mrf.mxu0
    %v368 = vadd.f32 %v285, %v367
    %369 = vmatmul.f32.gmra.mxu0 %v264
    %v370 = vpop.f32.mrf.mxu0
    %v371 = vadd.f32 %v285, %v370
    %372 = vmatmul.f32.gmra.mxu0 %v265
    %v373 = vpop.f32.mrf.mxu0
    %v374 = vadd.f32 %v285, %v373
    %375 = vmatmul.f32.gmra.mxu0 %v266
    %v376 = vpop.f32.mrf.mxu0
    %v377 = vadd.f32 %v285, %v376
    %378 = vdwg.mxu0
    %v379 = vmax.f32 %v305, 0.0
    %v380 = vmax.f32 %v308, 0.0
    %v381 = vmax.f32 %v311, 0.0
    %v382 = vmax.f32 %v314, 0.0
    %v383 = vmax.f32 %v317, 0.0
    %v384 = vmax.f32 %v320, 0.0
    %v385 = vmax.f32 %v323, 0.0
    %v386 = vmax.f32 %v326, 0.0
    %v387 = vmax.f32 %v329, 0.0
    %v388 = vmax.f32 %v332, 0.0
    %v389 = vmax.f32 %v335, 0.0
    %v390 = vmax.f32 %v338, 0.0
    %v391 = vmax.f32 %v341, 0.0
    %v392 = vmax.f32 %v344, 0.0
    %v393 = vmax.f32 %v347, 0.0
    %v394 = vmax.f32 %v350, 0.0
    %v395 = vmax.f32 %v353, 0.0
    %v396 = vmax.f32 %v356, 0.0
    %v397 = vmax.f32 %v359, 0.0
    %v398 = vmax.f32 %v362, 0.0
    %v399 = vmax.f32 %v365, 0.0
    %v400 = vmax.f32 %v368, 0.0
    %v401 = vmax.f32 %v371, 0.0
    %v402 = vmax.f32 %v374, 0.0
    %v403 = vmax.f32 %v377, 0.0
    %v404 = vld [vmem:[#allocation2] sm:$0xff]
    %v405 = vld [vmem:[#allocation2 + $0x8] sm:$0xff]
    %v406 = vld [vmem:[#allocation2 + $0x10] sm:$0xff]
    %v407 = vld [vmem:[#allocation2 + $0x18] sm:$0xff]
    %v408 = vld [vmem:[#allocation2 + $0x20] sm:$0xff]
    %v409 = vld [vmem:[#allocation2 + $0x28] sm:$0xff]
    %v410 = vld [vmem:[#allocation2 + $0x30] sm:$0xff]
    %v411 = vld [vmem:[#allocation2 + $0x38] sm:$0xff]
    %v412 = vld [vmem:[#allocation2 + $0x40] sm:$0xff]
    %v413 = vld [vmem:[#allocation2 + $0x48] sm:$0xff]
    %v414 = vld [vmem:[#allocation2 + $0x50] sm:$0xff]
    %v415 = vld [vmem:[#allocation2 + $0x58] sm:$0xff]
    %v416 = vld [vmem:[#allocation2 + $0x60] sm:$0xff]
    %v417 = vld [vmem:[#allocation2 + $0x68] sm:$0xff]
    %v418 = vld [vmem:[#allocation2 + $0x70] sm:$0xff]
    %v419 = vld [vmem:[#allocation2 + $0x78] sm:$0xff]
    %v420 = vld [vmem:[%s6] sm:$0x1]
    %v422 = vperm.slane %v420, 0
    %424 = vmatpush.msra.mxu0 %v419
    %425 = vmatpush.msra.mxu0 %v418
    %426 = vmatpush.msra.mxu0 %v417
    %427 = vmatpush.msra.mxu0 %v416
    %428 = vmatpush.msra.mxu0 %v415
    %429 = vmatpush.msra.mxu0 %v414
    %430 = vmatpush.msra.mxu0 %v413
    %431 = vmatpush.msra.mxu0 %v412
    %432 = vmatpush.msra.mxu0 %v411
    %433 = vmatpush.msra.mxu0 %v410
    %434 = vmatpush.msra.mxu0 %v409
    %435 = vmatpush.msra.mxu0 %v408
    %436 = vmatpush.msra.mxu0 %v407
    %437 = vmatpush.msra.mxu0 %v406
    %438 = vmatpush.msra.mxu0 %v405
    %439 = vmatpush.msra.mxu0 %v404
    %440 = vmatmul.f32.gmra.mxu0 %v379
    %v441 = vpop.f32.mrf.mxu0
    %v442 = vadd.f32 %v422, %v441
    %443 = vmatmul.f32.gmra.mxu0 %v380
    %v444 = vpop.f32.mrf.mxu0
    %v445 = vadd.f32 %v422, %v444
    %446 = vmatmul.f32.gmra.mxu0 %v381
    %v447 = vpop.f32.mrf.mxu0
    %v448 = vadd.f32 %v422, %v447
    %449 = vmatmul.f32.gmra.mxu0 %v382
    %v450 = vpop.f32.mrf.mxu0
    %v451 = vadd.f32 %v422, %v450
    %452 = vmatmul.f32.gmra.mxu0 %v383
    %v453 = vpop.f32.mrf.mxu0
    %v454 = vadd.f32 %v422, %v453
    %455 = vmatmul.f32.gmra.mxu0 %v384
    %v456 = vpop.f32.mrf.mxu0
    %v457 = vadd.f32 %v422, %v456
    %458 = vmatmul.f32.gmra.mxu0 %v385
    %v459 = vpop.f32.mrf.mxu0
    %v460 = vadd.f32 %v422, %v459
    %461 = vmatmul.f32.gmra.mxu0 %v386
    %v462 = vpop.f32.mrf.mxu0
    %v463 = vadd.f32 %v422, %v462
    %464 = vmatmul.f32.gmra.mxu0 %v387
    %v465 = vpop.f32.mrf.mxu0
    %v466 = vadd.f32 %v422, %v465
    %467 = vmatmul.f32.gmra.mxu0 %v388
    %v468 = vpop.f32.mrf.mxu0
    %v469 = vadd.f32 %v422, %v468
    %470 = vmatmul.f32.gmra.mxu0 %v389
    %v471 = vpop.f32.mrf.mxu0
    %v472 = vadd.f32 %v422, %v471
    %473 = vmatmul.f32.gmra.mxu0 %v390
    %v474 = vpop.f32.mrf.mxu0
    %v475 = vadd.f32 %v422, %v474
    %476 = vmatmul.f32.gmra.mxu0 %v391
    %v477 = vpop.f32.mrf.mxu0
    %v478 = vadd.f32 %v422, %v477
    %479 = vmatmul.f32.gmra.mxu0 %v392
    %v480 = vpop.f32.mrf.mxu0
    %v481 = vadd.f32 %v422, %v480
    %482 = vmatmul.f32.gmra.mxu0 %v393
    %v483 = vpop.f32.mrf.mxu0
    %v484 = vadd.f32 %v422, %v483
    %485 = vmatmul.f32.gmra.mxu0 %v394
    %v486 = vpop.f32.mrf.mxu0
    %v487 = vadd.f32 %v422, %v486
    %488 = vmatmul.f32.gmra.mxu0 %v395
    %v489 = vpop.f32.mrf.mxu0
    %v490 = vadd.f32 %v422, %v489
    %491 = vmatmul.f32.gmra.mxu0 %v396
    %v492 = vpop.f32.mrf.mxu0
    %v493 = vadd.f32 %v422, %v492
    %494 = vmatmul.f32.gmra.mxu0 %v397
    %v495 = vpop.f32.mrf.mxu0
    %v496 = vadd.f32 %v422, %v495
    %497 = vmatmul.f32.gmra.mxu0 %v398
    %v498 = vpop.f32.mrf.mxu0
    %v499 = vadd.f32 %v422, %v498
    %500 = vmatmul.f32.gmra.mxu0 %v399
    %v501 = vpop.f32.mrf.mxu0
    %v502 = vadd.f32 %v422, %v501
    %503 = vmatmul.f32.gmra.mxu0 %v400
    %v504 = vpop.f32.mrf.mxu0
    %v505 = vadd.f32 %v422, %v504
    %506 = vmatmul.f32.gmra.mxu0 %v401
    %v507 = vpop.f32.mrf.mxu0
    %v508 = vadd.f32 %v422, %v507
    %509 = vmatmul.f32.gmra.mxu0 %v402
    %v510 = vpop.f32.mrf.mxu0
    %v511 = vadd.f32 %v422, %v510
    %512 = vmatmul.f32.gmra.mxu0 %v403
    %v513 = vpop.f32.mrf.mxu0
    %v514 = vadd.f32 %v422, %v513
    %515 = vdwg.mxu0
    %516 = vst [vmem:[#allocation5] sm:$0xff] %v442
    %517 = vst [vmem:[#allocation5 + $0x8] sm:$0xff] %v445
    %518 = vst [vmem:[#allocation5 + $0x10] sm:$0xff] %v448
    %519 = vst [vmem:[#allocation5 + $0x18] sm:$0xff] %v451
    %520 = vst [vmem:[#allocation5 + $0x20] sm:$0xff] %v454
    %521 = vst [vmem:[#allocation5 + $0x28] sm:$0xff] %v457
    %522 = vst [vmem:[#allocation5 + $0x30] sm:$0xff] %v460
    %523 = vst [vmem:[#allocation5 + $0x38] sm:$0xff] %v463
    %524 = vst [vmem:[#allocation5 + $0x40] sm:$0xff] %v466
    %525 = vst [vmem:[#allocation5 + $0x48] sm:$0xff] %v469
    %526 = vst [vmem:[#allocation5 + $0x50] sm:$0xff] %v472
    %527 = vst [vmem:[#allocation5 + $0x58] sm:$0xff] %v475
    %528 = vst [vmem:[#allocation5 + $0x60] sm:$0xff] %v478
    %529 = vst [vmem:[#allocation5 + $0x68] sm:$0xff] %v481
    %530 = vst [vmem:[#allocation5 + $0x70] sm:$0xff] %v484
    %531 = vst [vmem:[#allocation5 + $0x78] sm:$0xff] %v487
    %532 = vst [vmem:[#allocation5 + $0x80] sm:$0xff] %v490
    %533 = vst [vmem:[#allocation5 + $0x88] sm:$0xff] %v493
    %534 = vst [vmem:[#allocation5 + $0x90] sm:$0xff] %v496
    %535 = vst [vmem:[#allocation5 + $0x98] sm:$0xff] %v499
    %536 = vst [vmem:[#allocation5 + $0xa0] sm:$0xff] %v502
    %537 = vst [vmem:[#allocation5 + $0xa8] sm:$0xff] %v505
    %538 = vst [vmem:[#allocation5 + $0xb0] sm:$0xff] %v508
    %539 = vst [vmem:[#allocation5 + $0xb8] sm:$0xff] %v511
    %540 = vst [vmem:[#allocation5 + $0xc0] sm:$0xff] %v514
    // Predicated region
    $region34: #{tpu_custom_call.1} parent=1 // pred_check
      _
    $region35: #{tpu_custom_call.1} parent=1 // pred_check_branch
      %542 = sbr.rel (0) target = $region37
    $region36: #{tpu_custom_call.1} parent=1 // pred_region
      %544 = vsyncadd [#allocation4], 0
      %s545 = sshll.u32 [#allocation5], 4
      %s546 = int_to_ptr.vmem [resolvable:$true] %s545
      %s547 = sshll.u32 %s7, 4
      %s548 = int_to_ptr.hbm [resolvable:$true] %s547
      %553 = dma.vmem_to_hbm [thread:$0]  %s546, 3200, %s548, [#allocation4], 128, 128, 8
    $region37: #{tpu_custom_call.1} parent=1 // pred_fallthru
      _
    // Predicated region
    $region38: #{tpu_custom_call.1} parent=1 // pred_check
      _
    $region39: #{tpu_custom_call.1} parent=1 // pred_check_branch
      %555 = sbr.rel (0) target = $region41
    $region40: #{tpu_custom_call.1} parent=1 // pred_region
      %557 = dma.done [#allocation4], 3200
    $region41: #{tpu_custom_call.1} parent=1 // pred_fallthru
      _
    %558 = vsyncpa [#allocation3], 1
    %559 = vsyncpa [#allocation4], 1

// kernel: tpu_custom_call.1
$region0: #{tpu_custom_call.1}
  #allocation0 [shape = 'u32[]', space=smem, size = 0x4, offset = 0x4, fixed_abs, tag = 'smem constant byte address 0x4 - core index']
  #allocation1 [shape = 'u32[72,128]{1,0:T(1,128)}', space=vmem, size = 0x9000, scoped, tag = 'internal scratch']
  %s0 = inlined_call_operand.vmem [shape: f32[200,16], index: 0, kind: input, shape index: {}]
  %s1 = inlined_call_operand.vmem [shape: f32[16,128], index: 1, kind: input, shape index: {}]
  %s2 = inlined_call_operand.vmem [shape: f32[1,128], index: 2, kind: input, shape index: {}]
  %s3 = inlined_call_operand.vmem [shape: f32[128,128], index: 3, kind: input, shape index: {}]
  %s4 = inlined_call_operand.vmem [shape: f32[1,128], index: 4, kind: input, shape index: {}]
  %s5 = inlined_call_operand.hbm [shape: f32[128,128], index: 5, kind: input, shape index: {}]
  %s6 = inlined_call_operand.vmem [shape: f32[1,128], index: 6, kind: input, shape index: {}]
  %s7 = inlined_call_operand.hbm [shape: f32[200,128], index: 7, kind: output, shape index: {}]
  %s8 = sld [smem:[#allocation0]]
  $region42: #{tpu_custom_call.1} parent=0
    _
  %s10 = ssub.s32 1, %s8
  %s11 = scalar_select 0, %s10, %s8
  $region1: #{tpu_custom_call.1} parent=0
    #allocation2 [shape = 'u8[65536]{0}', space=vmem, size = 0x10000, scoped, tag = 'input window, operand 5, single buffered']
    #allocation3 [shape = 's32[1]{0}', space=sflag, size = 0x4, scoped, tag = 'scoped memory for tpu_custom_call.1']
    #allocation4 [shape = 's32[1]{0}', space=sflag, size = 0x4, scoped, tag = 'scoped memory for tpu_custom_call.1']
    #allocation5 [shape = 'u8[102400]{0}', space=vmem, size = 0x19000, scoped, tag = 'output window, operand 0, single buffered']
    %12 = vsyncpa [#allocation3], 0
    %13 = vsyncpa [#allocation4], 0
    // Predicated region
    $region2: #{tpu_custom_call.1} parent=1 // pred_check
      _
    $region3: #{tpu_custom_call.1} parent=1 // pred_check_branch
      %15 = sbr.rel (0) target = $region5
    $region4: #{tpu_custom_call.1} parent=1 // pred_region
      _
    $region5: #{tpu_custom_call.1} parent=1 // pred_fallthru
      _
    // Predicated region
    $region6: #{tpu_custom_call.1} parent=1 // pred_check
      _
    $region7: #{tpu_custom_call.1} parent=1 // pred_check_branch
      %17 = sbr.rel (0) target = $region9
    $region8: #{tpu_custom_call.1} parent=1 // pred_region
      _
    $region9: #{tpu_custom_call.1} parent=1 // pred_fallthru
      _
    // Predicated region
    $region10: #{tpu_custom_call.1} parent=1 // pred_check
      _
    $region11: #{tpu_custom_call.1} parent=1 // pred_check_branch
      %19 = sbr.rel (0) target = $region13
    $region12: #{tpu_custom_call.1} parent=1 // pred_region
      _
    $region13: #{tpu_custom_call.1} parent=1 // pred_fallthru
      _
    // Predicated region
    $region14: #{tpu_custom_call.1} parent=1 // pred_check
      _
    $region15: #{tpu_custom_call.1} parent=1 // pred_check_branch
      %21 = sbr.rel (0) target = $region17
    $region16: #{tpu_custom_call.1} parent=1 // pred_region
      _
    $region17: #{tpu_custom_call.1} parent=1 // pred_fallthru
      _
    // Predicated region
    $region18: #{tpu_custom_call.1} parent=1 // pred_check
      _
    $region19: #{tpu_custom_call.1} parent=1 // pred_check_branch
      %23 = sbr.rel (0) target = $region21
    $region20: #{tpu_custom_call.1} parent=1 // pred_region
      _
    $region21: #{tpu_custom_call.1} parent=1 // pred_fallthru
      _
    // Predicated region
    $region22: #{tpu_custom_call.1} parent=1 // pred_check
      _
    $region23: #{tpu_custom_call.1} parent=1 // pred_check_branch
      %25 = sbr.rel (0) target = $region25
    $region24: #{tpu_custom_call.1} parent=1 // pred_region
      %27 = vsyncadd [#allocation3], 0
      %s28 = sshll.u32 %s5, 4
      %s29 = int_to_ptr.hbm [resolvable:$true] %s28
      %s30 = sshll.u32 [#allocation2], 4
      %s31 = int_to_ptr.vmem [resolvable:$true] %s30
      %36 = dma.hbm_to_vmem [thread:$0]  %s29, 2048, %s31, [#allocation3], 128, 128, 8
    $region25: #{tpu_custom_call.1} parent=1 // pred_fallthru
      _
    // Predicated region
    $region26: #{tpu_custom_call.1} parent=1 // pred_check
      _
    $region27: #{tpu_custom_call.1} parent=1 // pred_check_branch
      %38 = sbr.rel (0) target = $region29
    $region28: #{tpu_custom_call.1} parent=1 // pred_region
      _
    $region29: #{tpu_custom_call.1} parent=1 // pred_fallthru
      _
    // Predicated region
    $region30: #{tpu_custom_call.1} parent=1 // pred_check
      _
    $region31: #{tpu_custom_call.1} parent=1 // pred_check_branch
      %40 = sbr.rel (0) target = $region33
    $region32: #{tpu_custom_call.1} parent=1 // pred_region
      %42 = dma.done [#allocation3], 2048
    $region33: #{tpu_custom_call.1} parent=1 // pred_fallthru
      _
    %v43 = vld [vmem:[%s0] sm:$0xff]
    %v44 = vld [vmem:[%s0 + $0x8] sm:$0xff]
    %v45 = vld [vmem:[%s0 + $0x10] sm:$0xff]
    %v46 = vld [vmem:[%s0 + $0x18] sm:$0xff]
    %v47 = vld [vmem:[%s0 + $0x20] sm:$0xff]
    %v48 = vld [vmem:[%s0 + $0x28] sm:$0xff]
    %v49 = vld [vmem:[%s0 + $0x30] sm:$0xff]
    %v50 = vld [vmem:[%s0 + $0x38] sm:$0xff]
    %v51 = vld [vmem:[%s0 + $0x40] sm:$0xff]
    %v52 = vld [vmem:[%s0 + $0x48] sm:$0xff]
    %v53 = vld [vmem:[%s0 + $0x50] sm:$0xff]
    %v54 = vld [vmem:[%s0 + $0x58] sm:$0xff]
    %v55 = vld [vmem:[%s0 + $0x60] sm:$0xff]
    %v56 = vld [vmem:[%s0 + $0x68] sm:$0xff]
    %v57 = vld [vmem:[%s0 + $0x70] sm:$0xff]
    %v58 = vld [vmem:[%s0 + $0x78] sm:$0xff]
    %v59 = vld [vmem:[%s0 + $0x80] sm:$0xff]
    %v60 = vld [vmem:[%s0 + $0x88] sm:$0xff]
    %v61 = vld [vmem:[%s0 + $0x90] sm:$0xff]
    %v62 = vld [vmem:[%s0 + $0x98] sm:$0xff]
    %v63 = vld [vmem:[%s0 + $0xa0] sm:$0xff]
    %v64 = vld [vmem:[%s0 + $0xa8] sm:$0xff]
    %v65 = vld [vmem:[%s0 + $0xb0] sm:$0xff]
    %v66 = vld [vmem:[%s0 + $0xb8] sm:$0xff]
    %v67 = vld [vmem:[%s0 + $0xc0] sm:$0xff]
    %v68 = vld [vmem:[%s1] sm:$0xff]
    %v69 = vld [vmem:[%s1 + $0x8] sm:$0xff]
    %v70 = vld [vmem:[%s2] sm:$0x1]
    %v72 = vperm.slane %v70, 0
    %vm74 = vcmask 130048
    %v76 = vsel %vm74, %v43, 0
    %v79 = vsel %vm74, %v44, 0
    %v82 = vsel %vm74, %v45, 0
    %v85 = vsel %vm74, %v46, 0
    %v88 = vsel %vm74, %v47, 0
    %v91 = vsel %vm74, %v48, 0
    %v94 = vsel %vm74, %v49, 0
    %v97 = vsel %vm74, %v50, 0
    %v100 = vsel %vm74, %v51, 0
    %v103 = vsel %vm74, %v52, 0
    %v106 = vsel %vm74, %v53, 0
    %v109 = vsel %vm74, %v54, 0
    %v112 = vsel %vm74, %v55, 0
    %v115 = vsel %vm74, %v56, 0
    %v118 = vsel %vm74, %v57, 0
    %v121 = vsel %vm74, %v58, 0
    %v124 = vsel %vm74, %v59, 0
    %v127 = vsel %vm74, %v60, 0
    %v130 = vsel %vm74, %v61, 0
    %v133 = vsel %vm74, %v62, 0
    %v136 = vsel %vm74, %v63, 0
    %v139 = vsel %vm74, %v64, 0
    %v142 = vsel %vm74, %v65, 0
    %v145 = vsel %vm74, %v66, 0
    %v148 = vsel %vm74, %v67, 0
    %150 = vmatpush.msra.mxu0 0.0
    %151 = vmatpush.msra.mxu0 0.0
    %152 = vmatpush.msra.mxu0 0.0
    %153 = vmatpush.msra.mxu0 0.0
    %154 = vmatpush.msra.mxu0 0.0
    %155 = vmatpush.msra.mxu0 0.0
    %156 = vmatpush.msra.mxu0 0.0
    %157 = vmatpush.msra.mxu0 0.0
    %158 = vmatpush.msra.mxu0 0.0
    %159 = vmatpush.msra.mxu0 0.0
    %160 = vmatpush.msra.mxu0 0.0
    %161 = vmatpush.msra.mxu0 0.0
    %162 = vmatpush.msra.mxu0 0.0
    %163 = vmatpush.msra.mxu0 0.0
    %164 = vmatpush.msra.mxu0 %v69
    %165 = vmatpush.msra.mxu0 %v68
    %166 = vmatmul.f32.gmra.mxu0 %v76
    %v167 = vpop.f32.mrf.mxu0
    %v168 = vadd.f32 %v72, %v167
    %169 = vmatmul.f32.gmra.mxu0 %v79
    %v170 = vpop.f32.mrf.mxu0
    %v171 = vadd.f32 %v72, %v170
    %172 = vmatmul.f32.gmra.mxu0 %v82
    %v173 = vpop.f32.mrf.mxu0
    %v174 = vadd.f32 %v72, %v173
    %175 = vmatmul.f32.gmra.mxu0 %v85
    %v176 = vpop.f32.mrf.mxu0
    %v177 = vadd.f32 %v72, %v176
    %178 = vmatmul.f32.gmra.mxu0 %v88
    %v179 = vpop.f32.mrf.mxu0
    %v180 = vadd.f32 %v72, %v179
    %181 = vmatmul.f32.gmra.mxu0 %v91
    %v182 = vpop.f32.mrf.mxu0
    %v183 = vadd.f32 %v72, %v182
    %184 = vmatmul.f32.gmra.mxu0 %v94
    %v185 = vpop.f32.mrf.mxu0
    %v186 = vadd.f32 %v72, %v185
    %187 = vmatmul.f32.gmra.mxu0 %v97
    %v188 = vpop.f32.mrf.mxu0
    %v189 = vadd.f32 %v72, %v188
    %190 = vmatmul.f32.gmra.mxu0 %v100
    %v191 = vpop.f32.mrf.mxu0
    %v192 = vadd.f32 %v72, %v191
    %193 = vmatmul.f32.gmra.mxu0 %v103
    %v194 = vpop.f32.mrf.mxu0
    %v195 = vadd.f32 %v72, %v194
    %196 = vmatmul.f32.gmra.mxu0 %v106
    %v197 = vpop.f32.mrf.mxu0
    %v198 = vadd.f32 %v72, %v197
    %199 = vmatmul.f32.gmra.mxu0 %v109
    %v200 = vpop.f32.mrf.mxu0
    %v201 = vadd.f32 %v72, %v200
    %202 = vmatmul.f32.gmra.mxu0 %v112
    %v203 = vpop.f32.mrf.mxu0
    %v204 = vadd.f32 %v72, %v203
    %205 = vmatmul.f32.gmra.mxu0 %v115
    %v206 = vpop.f32.mrf.mxu0
    %v207 = vadd.f32 %v72, %v206
    %208 = vmatmul.f32.gmra.mxu0 %v118
    %v209 = vpop.f32.mrf.mxu0
    %v210 = vadd.f32 %v72, %v209
    %211 = vmatmul.f32.gmra.mxu0 %v121
    %v212 = vpop.f32.mrf.mxu0
    %v213 = vadd.f32 %v72, %v212
    %214 = vmatmul.f32.gmra.mxu0 %v124
    %v215 = vpop.f32.mrf.mxu0
    %v216 = vadd.f32 %v72, %v215
    %217 = vmatmul.f32.gmra.mxu0 %v127
    %v218 = vpop.f32.mrf.mxu0
    %v219 = vadd.f32 %v72, %v218
    %220 = vmatmul.f32.gmra.mxu0 %v130
    %v221 = vpop.f32.mrf.mxu0
    %v222 = vadd.f32 %v72, %v221
    %223 = vmatmul.f32.gmra.mxu0 %v133
    %v224 = vpop.f32.mrf.mxu0
    %v225 = vadd.f32 %v72, %v224
    %226 = vmatmul.f32.gmra.mxu0 %v136
    %v227 = vpop.f32.mrf.mxu0
    %v228 = vadd.f32 %v72, %v227
    %229 = vmatmul.f32.gmra.mxu0 %v139
    %v230 = vpop.f32.mrf.mxu0
    %v231 = vadd.f32 %v72, %v230
    %232 = vmatmul.f32.gmra.mxu0 %v142
    %v233 = vpop.f32.mrf.mxu0
    %v234 = vadd.f32 %v72, %v233
    %235 = vmatmul.f32.gmra.mxu0 %v145
    %v236 = vpop.f32.mrf.mxu0
    %v237 = vadd.f32 %v72, %v236
    %238 = vmatmul.f32.gmra.mxu0 %v148
    %v239 = vpop.f32.mrf.mxu0
    %v240 = vadd.f32 %v72, %v239
    %241 = vdwg.mxu0
    %v242 = vmax.f32 %v168, 0.0
    %v243 = vmax.f32 %v171, 0.0
    %v244 = vmax.f32 %v174, 0.0
    %v245 = vmax.f32 %v177, 0.0
    %v246 = vmax.f32 %v180, 0.0
    %v247 = vmax.f32 %v183, 0.0
    %v248 = vmax.f32 %v186, 0.0
    %v249 = vmax.f32 %v189, 0.0
    %v250 = vmax.f32 %v192, 0.0
    %v251 = vmax.f32 %v195, 0.0
    %v252 = vmax.f32 %v198, 0.0
    %v253 = vmax.f32 %v201, 0.0
    %v254 = vmax.f32 %v204, 0.0
    %v255 = vmax.f32 %v207, 0.0
    %v256 = vmax.f32 %v210, 0.0
    %v257 = vmax.f32 %v213, 0.0
    %v258 = vmax.f32 %v216, 0.0
    %v259 = vmax.f32 %v219, 0.0
    %v260 = vmax.f32 %v222, 0.0
    %v261 = vmax.f32 %v225, 0.0
    %v262 = vmax.f32 %v228, 0.0
    %v263 = vmax.f32 %v231, 0.0
    %v264 = vmax.f32 %v234, 0.0
    %v265 = vmax.f32 %v237, 0.0
    %v266 = vmax.f32 %v240, 0.0
    %v267 = vld [vmem:[%s3] sm:$0xff]
    %v268 = vld [vmem:[%s3 + $0x8] sm:$0xff]
    %v269 = vld [vmem:[%s3 + $0x10] sm:$0xff]
    %v270 = vld [vmem:[%s3 + $0x18] sm:$0xff]
    %v271 = vld [vmem:[%s3 + $0x20] sm:$0xff]
    %v272 = vld [vmem:[%s3 + $0x28] sm:$0xff]
    %v273 = vld [vmem:[%s3 + $0x30] sm:$0xff]
    %v274 = vld [vmem:[%s3 + $0x38] sm:$0xff]
    %v275 = vld [vmem:[%s3 + $0x40] sm:$0xff]
    %v276 = vld [vmem:[%s3 + $0x48] sm:$0xff]
    %v277 = vld [vmem:[%s3 + $0x50] sm:$0xff]
    %v278 = vld [vmem:[%s3 + $0x58] sm:$0xff]
    %v279 = vld [vmem:[%s3 + $0x60] sm:$0xff]
    %v280 = vld [vmem:[%s3 + $0x68] sm:$0xff]
    %v281 = vld [vmem:[%s3 + $0x70] sm:$0xff]
    %v282 = vld [vmem:[%s3 + $0x78] sm:$0xff]
    %v283 = vld [vmem:[%s4] sm:$0x1]
    %v285 = vperm.slane %v283, 0
    %287 = vmatpush.msra.mxu0 %v282
    %288 = vmatpush.msra.mxu0 %v281
    %289 = vmatpush.msra.mxu0 %v280
    %290 = vmatpush.msra.mxu0 %v279
    %291 = vmatpush.msra.mxu0 %v278
    %292 = vmatpush.msra.mxu0 %v277
    %293 = vmatpush.msra.mxu0 %v276
    %294 = vmatpush.msra.mxu0 %v275
    %295 = vmatpush.msra.mxu0 %v274
    %296 = vmatpush.msra.mxu0 %v273
    %297 = vmatpush.msra.mxu0 %v272
    %298 = vmatpush.msra.mxu0 %v271
    %299 = vmatpush.msra.mxu0 %v270
    %300 = vmatpush.msra.mxu0 %v269
    %301 = vmatpush.msra.mxu0 %v268
    %302 = vmatpush.msra.mxu0 %v267
    %303 = vmatmul.f32.gmra.mxu0 %v242
    %v304 = vpop.f32.mrf.mxu0
    %v305 = vadd.f32 %v285, %v304
    %306 = vmatmul.f32.gmra.mxu0 %v243
    %v307 = vpop.f32.mrf.mxu0
    %v308 = vadd.f32 %v285, %v307
    %309 = vmatmul.f32.gmra.mxu0 %v244
    %v310 = vpop.f32.mrf.mxu0
    %v311 = vadd.f32 %v285, %v310
    %312 = vmatmul.f32.gmra.mxu0 %v245
    %v313 = vpop.f32.mrf.mxu0
    %v314 = vadd.f32 %v285, %v313
    %315 = vmatmul.f32.gmra.mxu0 %v246
    %v316 = vpop.f32.mrf.mxu0
    %v317 = vadd.f32 %v285, %v316
    %318 = vmatmul.f32.gmra.mxu0 %v247
    %v319 = vpop.f32.mrf.mxu0
    %v320 = vadd.f32 %v285, %v319
    %321 = vmatmul.f32.gmra.mxu0 %v248
    %v322 = vpop.f32.mrf.mxu0
    %v323 = vadd.f32 %v285, %v322
    %324 = vmatmul.f32.gmra.mxu0 %v249
    %v325 = vpop.f32.mrf.mxu0
    %v326 = vadd.f32 %v285, %v325
    %327 = vmatmul.f32.gmra.mxu0 %v250
    %v328 = vpop.f32.mrf.mxu0
    %v329 = vadd.f32 %v285, %v328
    %330 = vmatmul.f32.gmra.mxu0 %v251
    %v331 = vpop.f32.mrf.mxu0
    %v332 = vadd.f32 %v285, %v331
    %333 = vmatmul.f32.gmra.mxu0 %v252
    %v334 = vpop.f32.mrf.mxu0
    %v335 = vadd.f32 %v285, %v334
    %336 = vmatmul.f32.gmra.mxu0 %v253
    %v337 = vpop.f32.mrf.mxu0
    %v338 = vadd.f32 %v285, %v337
    %339 = vmatmul.f32.gmra.mxu0 %v254
    %v340 = vpop.f32.mrf.mxu0
    %v341 = vadd.f32 %v285, %v340
    %342 = vmatmul.f32.gmra.mxu0 %v255
    %v343 = vpop.f32.mrf.mxu0
    %v344 = vadd.f32 %v285, %v343
    %345 = vmatmul.f32.gmra.mxu0 %v256
    %v346 = vpop.f32.mrf.mxu0
    %v347 = vadd.f32 %v285, %v346
    %348 = vmatmul.f32.gmra.mxu0 %v257
    %v349 = vpop.f32.mrf.mxu0
    %v350 = vadd.f32 %v285, %v349
    %351 = vmatmul.f32.gmra.mxu0 %v258
    %v352 = vpop.f32.mrf.mxu0
    %v353 = vadd.f32 %v285, %v352
    %354 = vmatmul.f32.gmra.mxu0 %v259
    %v355 = vpop.f32.mrf.mxu0
    %v356 = vadd.f32 %v285, %v355
    %357 = vmatmul.f32.gmra.mxu0 %v260
    %v358 = vpop.f32.mrf.mxu0
    %v359 = vadd.f32 %v285, %v358
    %360 = vmatmul.f32.gmra.mxu0 %v261
    %v361 = vpop.f32.mrf.mxu0
    %v362 = vadd.f32 %v285, %v361
    %363 = vmatmul.f32.gmra.mxu0 %v262
    %v364 = vpop.f32.mrf.mxu0
    %v365 = vadd.f32 %v285, %v364
    %366 = vmatmul.f32.gmra.mxu0 %v263
    %v367 = vpop.f32.mrf.mxu0
    %v368 = vadd.f32 %v285, %v367
    %369 = vmatmul.f32.gmra.mxu0 %v264
    %v370 = vpop.f32.mrf.mxu0
    %v371 = vadd.f32 %v285, %v370
    %372 = vmatmul.f32.gmra.mxu0 %v265
    %v373 = vpop.f32.mrf.mxu0
    %v374 = vadd.f32 %v285, %v373
    %375 = vmatmul.f32.gmra.mxu0 %v266
    %v376 = vpop.f32.mrf.mxu0
    %v377 = vadd.f32 %v285, %v376
    %378 = vdwg.mxu0
    %v379 = vmax.f32 %v305, 0.0
    %v380 = vmax.f32 %v308, 0.0
    %v381 = vmax.f32 %v311, 0.0
    %v382 = vmax.f32 %v314, 0.0
    %v383 = vmax.f32 %v317, 0.0
    %v384 = vmax.f32 %v320, 0.0
    %v385 = vmax.f32 %v323, 0.0
    %v386 = vmax.f32 %v326, 0.0
    %v387 = vmax.f32 %v329, 0.0
    %v388 = vmax.f32 %v332, 0.0
    %v389 = vmax.f32 %v335, 0.0
    %v390 = vmax.f32 %v338, 0.0
    %v391 = vmax.f32 %v341, 0.0
    %v392 = vmax.f32 %v344, 0.0
    %v393 = vmax.f32 %v347, 0.0
    %v394 = vmax.f32 %v350, 0.0
    %v395 = vmax.f32 %v353, 0.0
    %v396 = vmax.f32 %v356, 0.0
    %v397 = vmax.f32 %v359, 0.0
    %v398 = vmax.f32 %v362, 0.0
    %v399 = vmax.f32 %v365, 0.0
    %v400 = vmax.f32 %v368, 0.0
    %v401 = vmax.f32 %v371, 0.0
    %v402 = vmax.f32 %v374, 0.0
    %v403 = vmax.f32 %v377, 0.0
    %v404 = vld [vmem:[#allocation2] sm:$0xff]
    %v405 = vld [vmem:[#allocation2 + $0x8] sm:$0xff]
    %v406 = vld [vmem:[#allocation2 + $0x10] sm:$0xff]
    %v407 = vld [vmem:[#allocation2 + $0x18] sm:$0xff]
    %v408 = vld [vmem:[#allocation2 + $0x20] sm:$0xff]
    %v409 = vld [vmem:[#allocation2 + $0x28] sm:$0xff]
    %v410 = vld [vmem:[#allocation2 + $0x30] sm:$0xff]
    %v411 = vld [vmem:[#allocation2 + $0x38] sm:$0xff]
    %v412 = vld [vmem:[#allocation2 + $0x40] sm:$0xff]
    %v413 = vld [vmem:[#allocation2 + $0x48] sm:$0xff]
    %v414 = vld [vmem:[#allocation2 + $0x50] sm:$0xff]
    %v415 = vld [vmem:[#allocation2 + $0x58] sm:$0xff]
    %v416 = vld [vmem:[#allocation2 + $0x60] sm:$0xff]
    %v417 = vld [vmem:[#allocation2 + $0x68] sm:$0xff]
    %v418 = vld [vmem:[#allocation2 + $0x70] sm:$0xff]
    %v419 = vld [vmem:[#allocation2 + $0x78] sm:$0xff]
    %v420 = vld [vmem:[%s6] sm:$0x1]
    %v422 = vperm.slane %v420, 0
    %424 = vmatpush.msra.mxu0 %v419
    %425 = vmatpush.msra.mxu0 %v418
    %426 = vmatpush.msra.mxu0 %v417
    %427 = vmatpush.msra.mxu0 %v416
    %428 = vmatpush.msra.mxu0 %v415
    %429 = vmatpush.msra.mxu0 %v414
    %430 = vmatpush.msra.mxu0 %v413
    %431 = vmatpush.msra.mxu0 %v412
    %432 = vmatpush.msra.mxu0 %v411
    %433 = vmatpush.msra.mxu0 %v410
    %434 = vmatpush.msra.mxu0 %v409
    %435 = vmatpush.msra.mxu0 %v408
    %436 = vmatpush.msra.mxu0 %v407
    %437 = vmatpush.msra.mxu0 %v406
    %438 = vmatpush.msra.mxu0 %v405
    %439 = vmatpush.msra.mxu0 %v404
    %440 = vmatmul.f32.gmra.mxu0 %v379
    %v441 = vpop.f32.mrf.mxu0
    %v442 = vadd.f32 %v422, %v441
    %443 = vmatmul.f32.gmra.mxu0 %v380
    %v444 = vpop.f32.mrf.mxu0
    %v445 = vadd.f32 %v422, %v444
    %446 = vmatmul.f32.gmra.mxu0 %v381
    %v447 = vpop.f32.mrf.mxu0
    %v448 = vadd.f32 %v422, %v447
    %449 = vmatmul.f32.gmra.mxu0 %v382
    %v450 = vpop.f32.mrf.mxu0
    %v451 = vadd.f32 %v422, %v450
    %452 = vmatmul.f32.gmra.mxu0 %v383
    %v453 = vpop.f32.mrf.mxu0
    %v454 = vadd.f32 %v422, %v453
    %455 = vmatmul.f32.gmra.mxu0 %v384
    %v456 = vpop.f32.mrf.mxu0
    %v457 = vadd.f32 %v422, %v456
    %458 = vmatmul.f32.gmra.mxu0 %v385
    %v459 = vpop.f32.mrf.mxu0
    %v460 = vadd.f32 %v422, %v459
    %461 = vmatmul.f32.gmra.mxu0 %v386
    %v462 = vpop.f32.mrf.mxu0
    %v463 = vadd.f32 %v422, %v462
    %464 = vmatmul.f32.gmra.mxu0 %v387
    %v465 = vpop.f32.mrf.mxu0
    %v466 = vadd.f32 %v422, %v465
    %467 = vmatmul.f32.gmra.mxu0 %v388
    %v468 = vpop.f32.mrf.mxu0
    %v469 = vadd.f32 %v422, %v468
    %470 = vmatmul.f32.gmra.mxu0 %v389
    %v471 = vpop.f32.mrf.mxu0
    %v472 = vadd.f32 %v422, %v471
    %473 = vmatmul.f32.gmra.mxu0 %v390
    %v474 = vpop.f32.mrf.mxu0
    %v475 = vadd.f32 %v422, %v474
    %476 = vmatmul.f32.gmra.mxu0 %v391
    %v477 = vpop.f32.mrf.mxu0
    %v478 = vadd.f32 %v422, %v477
    %479 = vmatmul.f32.gmra.mxu0 %v392
    %v480 = vpop.f32.mrf.mxu0
    %v481 = vadd.f32 %v422, %v480
    %482 = vmatmul.f32.gmra.mxu0 %v393
    %v483 = vpop.f32.mrf.mxu0
    %v484 = vadd.f32 %v422, %v483
    %485 = vmatmul.f32.gmra.mxu0 %v394
    %v486 = vpop.f32.mrf.mxu0
    %v487 = vadd.f32 %v422, %v486
    %488 = vmatmul.f32.gmra.mxu0 %v395
    %v489 = vpop.f32.mrf.mxu0
    %v490 = vadd.f32 %v422, %v489
    %491 = vmatmul.f32.gmra.mxu0 %v396
    %v492 = vpop.f32.mrf.mxu0
    %v493 = vadd.f32 %v422, %v492
    %494 = vmatmul.f32.gmra.mxu0 %v397
    %v495 = vpop.f32.mrf.mxu0
    %v496 = vadd.f32 %v422, %v495
    %497 = vmatmul.f32.gmra.mxu0 %v398
    %v498 = vpop.f32.mrf.mxu0
    %v499 = vadd.f32 %v422, %v498
    %500 = vmatmul.f32.gmra.mxu0 %v399
    %v501 = vpop.f32.mrf.mxu0
    %v502 = vadd.f32 %v422, %v501
    %503 = vmatmul.f32.gmra.mxu0 %v400
    %v504 = vpop.f32.mrf.mxu0
    %v505 = vadd.f32 %v422, %v504
    %506 = vmatmul.f32.gmra.mxu0 %v401
    %v507 = vpop.f32.mrf.mxu0
    %v508 = vadd.f32 %v422, %v507
    %509 = vmatmul.f32.gmra.mxu0 %v402
    %v510 = vpop.f32.mrf.mxu0
    %v511 = vadd.f32 %v422, %v510
    %512 = vmatmul.f32.gmra.mxu0 %v403
    %v513 = vpop.f32.mrf.mxu0
    %v514 = vadd.f32 %v422, %v513
    %515 = vdwg.mxu0
    %516 = vst [vmem:[#allocation5] sm:$0xff] %v442
    %517 = vst [vmem:[#allocation5 + $0x8] sm:$0xff] %v445
    %518 = vst [vmem:[#allocation5 + $0x10] sm:$0xff] %v448
    %519 = vst [vmem:[#allocation5 + $0x18] sm:$0xff] %v451
    %520 = vst [vmem:[#allocation5 + $0x20] sm:$0xff] %v454
    %521 = vst [vmem:[#allocation5 + $0x28] sm:$0xff] %v457
    %522 = vst [vmem:[#allocation5 + $0x30] sm:$0xff] %v460
    %523 = vst [vmem:[#allocation5 + $0x38] sm:$0xff] %v463
    %524 = vst [vmem:[#allocation5 + $0x40] sm:$0xff] %v466
    %525 = vst [vmem:[#allocation5 + $0x48] sm:$0xff] %v469
    %526 = vst [vmem:[#allocation5 + $0x50] sm:$0xff] %v472
    %527 = vst [vmem:[#allocation5 + $0x58] sm:$0xff] %v475
    %528 = vst [vmem:[#allocation5 + $0x60] sm:$0xff] %v478
    %529 = vst [vmem:[#allocation5 + $0x68] sm:$0xff] %v481
    %530 = vst [vmem:[#allocation5 + $0x70] sm:$0xff] %v484
    %531 = vst [vmem:[#allocation5 + $0x78] sm:$0xff] %v487
    %532 = vst [vmem:[#allocation5 + $0x80] sm:$0xff] %v490
    %533 = vst [vmem:[#allocation5 + $0x88] sm:$0xff] %v493
    %534 = vst [vmem:[#allocation5 + $0x90] sm:$0xff] %v496
    %535 = vst [vmem:[#allocation5 + $0x98] sm:$0xff] %v499
    %536 = vst [vmem:[#allocation5 + $0xa0] sm:$0xff] %v502
    %537 = vst [vmem:[#allocation5 + $0xa8] sm:$0xff] %v505
    %538 = vst [vmem:[#allocation5 + $0xb0] sm:$0xff] %v508
    %539 = vst [vmem:[#allocation5 + $0xb8] sm:$0xff] %v511
    %540 = vst [vmem:[#allocation5 + $0xc0] sm:$0xff] %v514
    // Predicated region
    $region34: #{tpu_custom_call.1} parent=1 // pred_check
      _
    $region35: #{tpu_custom_call.1} parent=1 // pred_check_branch
      %542 = sbr.rel (0) target = $region37
    $region36: #{tpu_custom_call.1} parent=1 // pred_region
      %544 = vsyncadd [#allocation4], 0
      %s545 = sshll.u32 [#allocation5], 4
      %s546 = int_to_ptr.vmem [resolvable:$true] %s545
      %s547 = sshll.u32 %s7, 4
      %s548 = int_to_ptr.hbm [resolvable:$true] %s547
      %553 = dma.vmem_to_hbm [thread:$0]  %s546, 3200, %s548, [#allocation4], 128, 128, 8
    $region37: #{tpu_custom_call.1} parent=1 // pred_fallthru
      _
    // Predicated region
    $region38: #{tpu_custom_call.1} parent=1 // pred_check
      _
    $region39: #{tpu_custom_call.1} parent=1 // pred_check_branch
      %555 = sbr.rel (0) target = $region41
    $region40: #{tpu_custom_call.1} parent=1 // pred_region
      %557 = dma.done [#allocation4], 3200
    $region41: #{tpu_custom_call.1} parent=1 // pred_fallthru
      _
    %558 = vsyncpa [#allocation3], 1
    %559 = vsyncpa [#allocation4], 1

</llo_original>
